<compile_context>
chip_gen: v7x
topology: tpu7x:2x2x1
jax: 0.10.0
libtpu: 0.0.40
codegen_flags: <defaults>
</compile_context>

<pallas_src>
import functools

import jax
import jax.numpy as jnp
from jax.experimental import pallas as pl
from jax.experimental.pallas import tpu as pltpu


# ----------------------------- Pallas kernel --------------------------------
def _conv_bn_kernel(x_ref, w_ref, scale_ref, bias_ref, *rest,
                    apply_relu, has_residual):
    """One (TP, K) @ (K, Cout) matmul + fused BN / residual / ReLU epilogue."""
    if has_residual:
        res_ref, o_ref = rest
    else:
        (o_ref,) = rest

    acc = jnp.dot(x_ref[...], w_ref[...], preferred_element_type=jnp.float32)
    out = acc * scale_ref[...] + bias_ref[...]        # folded BatchNorm
    if has_residual:
        out = out + res_ref[...].astype(jnp.float32)  # shortcut add
    if apply_relu:
        out = jnp.maximum(out, 0.0)
    o_ref[...] = out.astype(o_ref.dtype)


def _round_up(x, m):
    return -(-x // m) * m


def _choose_tile(p):
    """Largest row-tile in {2048..128} that still gives >= 2 grid steps
    (so v7x's two TensorCores both get work); otherwise a single small tile."""
    for tp in (2048, 1024, 512, 256, 128):
        if p >= 2 * tp:
            return tp
    return 128 if p >= 128 else _round_up(p, 8)


def conv_bn_pallas(x_cols, w_mat, scale, bias, residual=None, *, apply_relu):
    """x_cols: (P, K) im2col activations, w_mat: (K, Cout), scale/bias: (1, Cout),
    residual: optional (P, Cout). Returns (P, Cout) f32."""
    p, k = x_cols.shape
    cout = w_mat.shape[-1]

    tp = _choose_tile(p)
    p_pad = _round_up(p, tp)
    cout_pad = _round_up(cout, 128)   # lane-dense output stores

    if p_pad != p:
        x_cols = jnp.pad(x_cols, ((0, p_pad - p), (0, 0)))
    if cout_pad != cout:
        w_mat = jnp.pad(w_mat, ((0, 0), (0, cout_pad - cout)))
        scale = jnp.pad(scale, ((0, 0), (0, cout_pad - cout)))
        bias = jnp.pad(bias, ((0, 0), (0, cout_pad - cout)))

    in_specs = [
        pl.BlockSpec((tp, k), lambda i: (i, 0)),          # activations (full K)
        pl.BlockSpec((k, cout_pad), lambda i: (0, 0)),    # weights (resident)
        pl.BlockSpec((1, cout_pad), lambda i: (0, 0)),    # bn scale
        pl.BlockSpec((1, cout_pad), lambda i: (0, 0)),    # bn bias
    ]
    args = [x_cols, w_mat, scale, bias]
    if residual is not None:
        residual = jnp.pad(residual, ((0, p_pad - p), (0, cout_pad - cout)))
        in_specs.append(pl.BlockSpec((tp, cout_pad), lambda i: (i, 0)))
        args.append(residual)

    kernel = functools.partial(_conv_bn_kernel, apply_relu=apply_relu,
                               has_residual=residual is not None)
    out = pl.pallas_call(
        kernel,
        out_shape=jax.ShapeDtypeStruct((p_pad, cout_pad), jnp.float32),
        grid_spec=pltpu.PrefetchScalarGridSpec(
            num_scalar_prefetch=0,
            grid=(p_pad // tp,),
            in_specs=in_specs,
            out_specs=pl.BlockSpec((tp, cout_pad), lambda i: (i, 0)),
        ),
        compiler_params=pltpu.CompilerParams(
            dimension_semantics=("parallel",),
            vmem_limit_bytes=32 * 1024 * 1024),
    )(*args)
    return out[:p, :cout]


# ------------------------------ JAX glue -------------------------------------
def _im2col(x_pad, hout, wout, stride, k):
    """(N, Hp, Wp, C) -> (N*hout*wout, k*k*C): taps concatenated on the channel
    (contraction) axis so the kernel does a single K=k*k*C matmul per tile."""
    n, _, _, c = x_pad.shape
    cols = []
    for ky in range(k):
        for kx in range(k):
            v = jax.lax.slice(
                x_pad,
                (0, ky, kx, 0),
                (n, ky + stride * (hout - 1) + 1, kx + stride * (wout - 1) + 1, c),
                (1, stride, stride, 1))
            cols.append(v.reshape(n * hout * wout, c))
    return jnp.concatenate(cols, axis=-1)


def _w_mat(w):  # (Cout, Cin, k, k) -> (k*k*Cin, Cout), matching _im2col order
    cout, cin, k, _ = w.shape
    return jnp.transpose(w, (2, 3, 1, 0)).reshape(k * k * cin, cout)


def _fold_bn(bn, eps=1e-5):
    gamma, beta, mean, var = bn
    s = gamma * jax.lax.rsqrt(var + eps)
    return s[None, :], (beta - mean * s)[None, :]


def basic_block_pallas(x_nchw, params, stride):
    x = jnp.transpose(x_nchw, (0, 2, 3, 1)).astype(jnp.float32)   # NHWC
    n, h, w, cin = x.shape
    cout = params["w1"].shape[0]
    hout = (h + 2 - 3) // stride + 1
    wout = (w + 2 - 3) // stride + 1
    p = n * hout * wout

    s1, b1 = _fold_bn(params["bn1"])
    s2, b2 = _fold_bn(params["bn2"])

    # conv1 (3x3, stride) + bn1 + relu -- no residual input, no zero DMA
    xp = jnp.pad(x, ((0, 0), (1, 1), (1, 1), (0, 0)))
    cols1 = _im2col(xp, hout, wout, stride, 3)
    out1 = conv_bn_pallas(cols1, _w_mat(params["w1"]), s1, b1,
                          residual=None, apply_relu=True)
    out1_nhwc = out1.reshape(n, hout, wout, cout)

    # shortcut
    if "w_sc" in params:
        s3, b3 = _fold_bn(params["bn_sc"])
        cols_sc = _im2col(x, hout, wout, stride, 1)   # 1x1 conv, no padding
        sc = conv_bn_pallas(cols_sc, _w_mat(params["w_sc"]), s3, b3,
                            residual=None, apply_relu=False)
    else:
        assert cin == cout and stride == 1, "identity shortcut requires same shape"
        sc = x.reshape(p, cout)

    # conv2 (3x3, stride 1) + bn2 + residual + relu (fully fused epilogue)
    o1p = jnp.pad(out1_nhwc, ((0, 0), (1, 1), (1, 1), (0, 0)))
    cols2 = _im2col(o1p, hout, wout, 1, 3)
    out = conv_bn_pallas(cols2, _w_mat(params["w2"]), s2, b2,
                         residual=sc, apply_relu=True)
    return jnp.transpose(out.reshape(n, hout, wout, cout), (0, 3, 1, 2))  # NCHW


# --------------------------- pure-JAX reference -------------------------------
def ref_basic_block(x_nchw, params, stride, eps=1e-5):
    x = jnp.transpose(x_nchw, (0, 2, 3, 1)).astype(jnp.float32)

    def conv(inp, wt, s, pad):
        w_hwio = jnp.transpose(wt, (2, 3, 1, 0))
        return jax.lax.conv_general_dilated(
            inp, w_hwio, (s, s), ((pad, pad), (pad, pad)),
            dimension_numbers=("NHWC", "HWIO", "NHWC"))

    def bn(inp, bnp):
        gamma, beta, mean, var = bnp
        return gamma * (inp - mean) * jax.lax.rsqrt(var + eps) + beta

    out = jax.nn.relu(bn(conv(x, params["w1"], stride, 1), params["bn1"]))
    out = bn(conv(out, params["w2"], 1, 1), params["bn2"])
    if "w_sc" in params:
        sc = bn(conv(x, params["w_sc"], stride, 0), params["bn_sc"])
    else:
        sc = x
    out = jax.nn.relu(out + sc)
    return jnp.transpose(out, (0, 3, 1, 2))


# ----------------------------- deterministic init -----------------------------
def _bn_params(c, seed):
    i = jnp.arange(c, dtype=jnp.float32)
    gamma = 1.0 + 0.05 * i + 0.01 * seed
    beta = 0.02 * i - 0.01 * seed
    mean = 0.03 * i
    var = 1.0 + 0.1 * i
    return (gamma, beta, mean, var)


def init_params(key, cin, cout, stride):
    k1, k2, k3 = jax.random.split(key, 3)
    params = {
        "w1": 0.1 * jax.random.normal(k1, (cout, cin, 3, 3), jnp.float32),
        "w2": 0.1 * jax.random.normal(k2, (cout, cout, 3, 3), jnp.float32),
        "bn1": _bn_params(cout, 0),
        "bn2": _bn_params(cout, 1),
    }
    if stride != 1 or cin != cout:
        params["w_sc"] = 0.1 * jax.random.normal(k3, (cout, cin, 1, 1), jnp.float32)
        params["bn_sc"] = _bn_params(cout, 2)
    return params


# ----------------------------------- main -------------------------------------
if __name__ == "__main__":
    key = jax.random.PRNGKey(0)
    kx1, kx2, kp1, kp2 = jax.random.split(key, 4)
    ok = True

    # Case A: projection shortcut (stride=2, 4 -> 8 channels), x NCHW (2,4,16,16)
    xA = jax.random.normal(kx1, (2, 4, 16, 16), jnp.float32)
    pA = init_params(kp1, 4, 8, 2)
    outA = jax.block_until_ready(basic_block_pallas(xA, pA, 2))
    refA = ref_basic_block(xA, pA, 2)
    ok &= bool(jnp.allclose(outA, refA, rtol=1e-4, atol=1e-4))

    # Case B: identity shortcut (stride=1, 8 -> 8 channels), x NCHW (2,8,16,16)
    xB = jax.random.normal(kx2, (2, 8, 16, 16), jnp.float32)
    pB = init_params(kp2, 8, 8, 1)
    outB = jax.block_until_ready(basic_block_pallas(xB, pB, 1))
    refB = ref_basic_block(xB, pB, 1)
    ok &= bool(jnp.allclose(outB, refB, rtol=1e-4, atol=1e-4))

    if ok:
        print("KERNEL_OK")
    else:
        print("MISMATCH")
</pallas_src>

<mosaic_0001>
module attributes {stable_mosaic.version = 11 : i64} {
  func.func @_conv_bn_kernel(%arg0: i32, %arg1: memref<128x36xf32, #tpu.memory_space<vmem>>, %arg2: memref<36x128xf32, #tpu.memory_space<vmem>>, %arg3: memref<1x128xf32, #tpu.memory_space<vmem>>, %arg4: memref<1x128xf32, #tpu.memory_space<vmem>>, %arg5: memref<128x128xf32, #tpu.memory_space<vmem>>) attributes {dimension_semantics = [#tpu.dimension_semantics<parallel>], iteration_bounds = array<i64: 1>, scalar_prefetch = 0 : i64, scratch_operands = 0 : i64, tpu.core_type = #tpu.core_type<tc>, window_params = [{transform_indices = @transform_0, window_bounds = array<i64: 128, 36>}, {pipeline_mode = #tpu.pipeline_mode<synchronous>, transform_indices = @transform_1, window_bounds = array<i64: 36, 128>}, {pipeline_mode = #tpu.pipeline_mode<synchronous>, transform_indices = @transform_2, window_bounds = array<i64: 1, 128>}, {pipeline_mode = #tpu.pipeline_mode<synchronous>, transform_indices = @transform_3, window_bounds = array<i64: 1, 128>}, {transform_indices = @transform_4, window_bounds = array<i64: 128, 128>}]} {
    %c0 = arith.constant 0 : index
    %c0_0 = arith.constant 0 : index
    %0 = vector.load %arg1[%c0, %c0_0] : memref<128x36xf32, #tpu.memory_space<vmem>>, vector<128x36xf32>
    %c0_1 = arith.constant 0 : index
    %c0_2 = arith.constant 0 : index
    %1 = vector.load %arg2[%c0_1, %c0_2] : memref<36x128xf32, #tpu.memory_space<vmem>>, vector<36x128xf32>
    %cst = arith.constant dense<0.000000e+00> : vector<128x128xf32>
    %2 = tpu.matmul %0, %1, %cst {dimension_numbers = #tpu.dot_dimension_numbers<[1], [0], [0], [1], [0, 0, 1, 1], [], []>} : vector<128x36xf32>, vector<36x128xf32>, vector<128x128xf32> -> vector<128x128xf32>
    %c0_3 = arith.constant 0 : index
    %c0_4 = arith.constant 0 : index
    %3 = vector.load %arg3[%c0_3, %c0_4] : memref<1x128xf32, #tpu.memory_space<vmem>>, vector<1x128xf32>
    %4 = vector.broadcast %3 : vector<1x128xf32> to vector<128x128xf32>
    %5 = arith.mulf %2, %4 : vector<128x128xf32>
    %c0_5 = arith.constant 0 : index
    %c0_6 = arith.constant 0 : index
    %6 = vector.load %arg4[%c0_5, %c0_6] : memref<1x128xf32, #tpu.memory_space<vmem>>, vector<1x128xf32>
    %7 = vector.broadcast %6 : vector<1x128xf32> to vector<128x128xf32>
    %8 = arith.addf %5, %7 : vector<128x128xf32>
    %cst_7 = arith.constant 0.000000e+00 : f32
    %9 = vector.broadcast %cst_7 : f32 to vector<128x128xf32>
    %10 = arith.maximumf %8, %9 : vector<128x128xf32>
    %c0_8 = arith.constant 0 : index
    %c0_9 = arith.constant 0 : index
    %11 = vector.load %arg5[%c0_8, %c0_9] : memref<128x128xf32, #tpu.memory_space<vmem>>, vector<128x128xf32>
    tpu.vector_store %arg5[%c0_8, %c0_9], %10 {strides = array<i32>} : memref<128x128xf32, #tpu.memory_space<vmem>>, vector<128x128xf32>,
    return
  }
  func.func @transform_0(%arg0: i32) -> (i32, i32) {
    %c0_i32 = arith.constant 0 : i32
    %c0_i32_0 = arith.constant 0 : i32
    return %arg0, %c0_i32 : i32, i32
  }
  func.func @transform_1(%arg0: i32) -> (i32, i32) {
    %c0_i32 = arith.constant 0 : i32
    %c0_i32_0 = arith.constant 0 : i32
    %c0_i32_1 = arith.constant 0 : i32
    return %c0_i32, %c0_i32_0 : i32, i32
  }
  func.func @transform_2(%arg0: i32) -> (i32, i32) {
    %c0_i32 = arith.constant 0 : i32
    %c0_i32_0 = arith.constant 0 : i32
    %c0_i32_1 = arith.constant 0 : i32
    return %c0_i32, %c0_i32_0 : i32, i32
  }
  func.func @transform_3(%arg0: i32) -> (i32, i32) {
    %c0_i32 = arith.constant 0 : i32
    %c0_i32_0 = arith.constant 0 : i32
    %c0_i32_1 = arith.constant 0 : i32
    return %c0_i32, %c0_i32_0 : i32, i32
  }
  func.func @transform_4(%arg0: i32) -> (i32, i32) {
    %c0_i32 = arith.constant 0 : i32
    %c0_i32_0 = arith.constant 0 : i32
    return %arg0, %c0_i32 : i32, i32
  }
}

</mosaic_0001>

<llo_original>
// kernel: tpu_custom_call.1
$region0: #{tpu_custom_call.1}
  #allocation0 [shape = 'u32[]', space=smem, size = 0x4, offset = 0x4, fixed_abs, tag = 'smem constant byte address 0x4 - core index']
  #allocation1 [shape = 'u32[144,128]{1,0:T(1,128)}', space=vmem, size = 0x12000, scoped, tag = 'internal scratch']
  %s0 = inlined_call_operand.vmem [shape: f32[128,36], index: 0, kind: input, shape index: {}]
  %s1 = inlined_call_operand.vmem [shape: f32[36,128], index: 1, kind: input, shape index: {}]
  %s2 = inlined_call_operand.vmem [shape: f32[1,128], index: 2, kind: input, shape index: {}]
  %s3 = inlined_call_operand.vmem [shape: f32[1,128], index: 3, kind: input, shape index: {}]
  %s4 = inlined_call_operand.hbm [shape: f32[128,128], index: 4, kind: output, shape index: {}]
  %s5 = sld [smem:[#allocation0]]
  $region26: #{tpu_custom_call.1} parent=0
    _
  %s7 = ssub.s32 1, %s5
  %s8 = scalar_select 0, %s7, %s5
  $region1: #{tpu_custom_call.1} parent=0
    #allocation2 [shape = 'u8[65536]{0}', space=vmem, size = 0x10000, scoped, tag = 'output window, operand 0, single buffered']
    #allocation3 [shape = 's32[1]{0}', space=sflag, size = 0x4, scoped, tag = 'scoped memory for tpu_custom_call.1']
    %9 = vsyncpa [#allocation3], 0
    // Predicated region
    $region2: #{tpu_custom_call.1} parent=1 // pred_check
      _
    $region3: #{tpu_custom_call.1} parent=1 // pred_check_branch
      %11 = sbr.rel (0) target = $region5
    $region4: #{tpu_custom_call.1} parent=1 // pred_region
      _
    $region5: #{tpu_custom_call.1} parent=1 // pred_fallthru
      _
    // Predicated region
    $region6: #{tpu_custom_call.1} parent=1 // pred_check
      _
    $region7: #{tpu_custom_call.1} parent=1 // pred_check_branch
      %13 = sbr.rel (0) target = $region9
    $region8: #{tpu_custom_call.1} parent=1 // pred_region
      _
    $region9: #{tpu_custom_call.1} parent=1 // pred_fallthru
      _
    // Predicated region
    $region10: #{tpu_custom_call.1} parent=1 // pred_check
      _
    $region11: #{tpu_custom_call.1} parent=1 // pred_check_branch
      %15 = sbr.rel (0) target = $region13
    $region12: #{tpu_custom_call.1} parent=1 // pred_region
      _
    $region13: #{tpu_custom_call.1} parent=1 // pred_fallthru
      _
    // Predicated region
    $region14: #{tpu_custom_call.1} parent=1 // pred_check
      _
    $region15: #{tpu_custom_call.1} parent=1 // pred_check_branch
      %17 = sbr.rel (0) target = $region17
    $region16: #{tpu_custom_call.1} parent=1 // pred_region
      _
    $region17: #{tpu_custom_call.1} parent=1 // pred_fallthru
      _
    %v18 = vld [vmem:[%s0] sm:$0xff]
    %v19 = vld [vmem:[%s0 + $0x8] sm:$0xff]
    %v20 = vld [vmem:[%s0 + $0x10] sm:$0xff]
    %v21 = vld [vmem:[%s0 + $0x18] sm:$0xff]
    %v22 = vld [vmem:[%s0 + $0x20] sm:$0xff]
    %v23 = vld [vmem:[%s0 + $0x28] sm:$0xff]
    %v24 = vld [vmem:[%s0 + $0x30] sm:$0xff]
    %v25 = vld [vmem:[%s0 + $0x38] sm:$0xff]
    %v26 = vld [vmem:[%s0 + $0x40] sm:$0xff]
    %v27 = vld [vmem:[%s0 + $0x48] sm:$0xff]
    %v28 = vld [vmem:[%s0 + $0x50] sm:$0xff]
    %v29 = vld [vmem:[%s0 + $0x58] sm:$0xff]
    %v30 = vld [vmem:[%s0 + $0x60] sm:$0xff]
    %v31 = vld [vmem:[%s0 + $0x68] sm:$0xff]
    %v32 = vld [vmem:[%s0 + $0x70] sm:$0xff]
    %v33 = vld [vmem:[%s0 + $0x78] sm:$0xff]
    %v34 = vld [vmem:[%s1] sm:$0xff]
    %v35 = vld [vmem:[%s1 + $0x8] sm:$0xff]
    %v36 = vld [vmem:[%s1 + $0x10] sm:$0xff]
    %v37 = vld [vmem:[%s1 + $0x18] sm:$0xff]
    %v38 = vld [vmem:[%s1 + $0x20] sm:$0xf]
    %vm39 = vcmask 293888
    %v41 = vsel %vm39, %v18, 0
    %v44 = vsel %vm39, %v19, 0
    %v47 = vsel %vm39, %v20, 0
    %v50 = vsel %vm39, %v21, 0
    %v53 = vsel %vm39, %v22, 0
    %v56 = vsel %vm39, %v23, 0
    %v59 = vsel %vm39, %v24, 0
    %v62 = vsel %vm39, %v25, 0
    %v65 = vsel %vm39, %v26, 0
    %v68 = vsel %vm39, %v27, 0
    %v71 = vsel %vm39, %v28, 0
    %v74 = vsel %vm39, %v29, 0
    %v77 = vsel %vm39, %v30, 0
    %v80 = vsel %vm39, %v31, 0
    %v83 = vsel %vm39, %v32, 0
    %v86 = vsel %vm39, %v33, 0
    %vm88 = vcmask 1043456
    %v90 = vsel %vm88, %v38, 0
    %92 = vmatprep.subr.mxu0 0.0
    %93 = vmatpush1.msra.mxu0 %v34
    %94 = vmatprep.subr.mxu0 0.0
    %95 = vmatpush1.msra.mxu0 %v35
    %96 = vmatprep.subr.mxu0 0.0
    %97 = vmatpush1.msra.mxu0 %v36
    %98 = vmatprep.subr.mxu0 0.0
    %99 = vmatpush1.msra.mxu0 %v37
    %100 = vmatprep.subr.mxu0 0.0
    %101 = vmatpush1.msra.mxu0 %v90
    %102 = vmatprep.subr.mxu0 0.0
    %103 = vmatpush1.msra.mxu0 0.0
    %104 = vmatprep.subr.mxu0 0.0
    %105 = vmatpush1.msra.mxu0 0.0
    %106 = vmatprep.subr.mxu0 0.0
    %107 = vmatpush1.msra.mxu0 0.0
    %108 = vmatprep.subr.mxu0 0.0
    %109 = vmatpush1.msra.mxu0 0.0
    %110 = vmatprep.subr.mxu0 0.0
    %111 = vmatpush1.msra.mxu0 0.0
    %112 = vmatprep.subr.mxu0 0.0
    %113 = vmatpush1.msra.mxu0 0.0
    %114 = vmatprep.subr.mxu0 0.0
    %115 = vmatpush1.msra.mxu0 0.0
    %116 = vmatprep.subr.mxu0 0.0
    %117 = vmatpush1.msra.mxu0 0.0
    %118 = vmatprep.subr.mxu0 0.0
    %119 = vmatpush1.msra.mxu0 0.0
    %120 = vmatprep.subr.mxu0 0.0
    %121 = vmatpush1.msra.mxu0 0.0
    %122 = vmatprep.subr.mxu0 0.0
    %123 = vmatpush1.msra.mxu0 0.0
    %124 = vmatprep.subr.mxu0 0.0
    %125 = vmatpush1.msra.mxu0 0.0
    %126 = vmatprep.subr.mxu0 0.0
    %127 = vmatpush1.msra.mxu0 0.0
    %128 = vmatprep.subr.mxu0 0.0
    %129 = vmatpush1.msra.mxu0 0.0
    %130 = vmatprep.subr.mxu0 0.0
    %131 = vmatpush1.msra.mxu0 0.0
    %132 = vmatprep.subr.mxu0 0.0
    %133 = vmatpush1.msra.mxu0 0.0
    %134 = vmatprep.subr.mxu0 0.0
    %135 = vmatpush1.msra.mxu0 0.0
    %136 = vmatprep.subr.mxu0 0.0
    %137 = vmatpush1.msra.mxu0 0.0
    %138 = vmatprep.subr.mxu0 0.0
    %139 = vmatpush1.msra.mxu0 0.0
    %140 = vmatprep.subr.mxu0 0.0
    %141 = vmatpush1.msra.mxu0 0.0
    %142 = vmatprep.subr.mxu0 0.0
    %143 = vmatpush1.msra.mxu0 0.0
    %144 = vmatprep.subr.mxu0 0.0
    %145 = vmatpush1.msra.mxu0 0.0
    %146 = vmatprep.subr.mxu0 0.0
    %147 = vmatpush1.msra.mxu0 0.0
    %148 = vmatprep.subr.mxu0 0.0
    %149 = vmatpush1.msra.mxu0 0.0
    %150 = vmatprep.subr.mxu0 0.0
    %151 = vmatpush1.msra.mxu0 0.0
    %152 = vmatprep.subr.mxu0 0.0
    %153 = vmatpush1.msra.mxu0 0.0
    %154 = vmatprep.subr.mxu0 0.0
    %155 = vmatpush1.msra.mxu0 0.0
    %156 = vmatprep.mubr.f32.mxu0 0.0
    %157 = vmatmul.mubr.f32.gmra.mrb[0].mxu0 %v41
    %v158 = vpop.f32.mrb[0].mxu0
    %v159 = vadd.f32 0.0, %v158
    %v160 = vpop.f32.mrb[0].mxu0
    %161 = vmatprep.mubr.f32.mxu0 0.0
    %162 = vmatmul.mubr.f32.gmra.mrb[0].mxu0 %v44
    %v163 = vpop.f32.mrb[0].mxu0
    %v164 = vadd.f32 0.0, %v163
    %v165 = vpop.f32.mrb[0].mxu0
    %166 = vmatprep.mubr.f32.mxu0 0.0
    %167 = vmatmul.mubr.f32.gmra.mrb[0].mxu0 %v47
    %v168 = vpop.f32.mrb[0].mxu0
    %v169 = vadd.f32 0.0, %v168
    %v170 = vpop.f32.mrb[0].mxu0
    %171 = vmatprep.mubr.f32.mxu0 0.0
    %172 = vmatmul.mubr.f32.gmra.mrb[0].mxu0 %v50
    %v173 = vpop.f32.mrb[0].mxu0
    %v174 = vadd.f32 0.0, %v173
    %v175 = vpop.f32.mrb[0].mxu0
    %176 = vmatprep.mubr.f32.mxu0 0.0
    %177 = vmatmul.mubr.f32.gmra.mrb[0].mxu0 %v53
    %v178 = vpop.f32.mrb[0].mxu0
    %v179 = vadd.f32 0.0, %v178
    %v180 = vpop.f32.mrb[0].mxu0
    %181 = vmatprep.mubr.f32.mxu0 0.0
    %182 = vmatmul.mubr.f32.gmra.mrb[0].mxu0 %v56
    %v183 = vpop.f32.mrb[0].mxu0
    %v184 = vadd.f32 0.0, %v183
    %v185 = vpop.f32.mrb[0].mxu0
    %186 = vmatprep.mubr.f32.mxu0 0.0
    %187 = vmatmul.mubr.f32.gmra.mrb[0].mxu0 %v59
    %v188 = vpop.f32.mrb[0].mxu0
    %v189 = vadd.f32 0.0, %v188
    %v190 = vpop.f32.mrb[0].mxu0
    %191 = vmatprep.mubr.f32.mxu0 0.0
    %192 = vmatmul.mubr.f32.gmra.mrb[0].mxu0 %v62
    %v193 = vpop.f32.mrb[0].mxu0
    %v194 = vadd.f32 0.0, %v193
    %v195 = vpop.f32.mrb[0].mxu0
    %196 = vmatprep.mubr.f32.mxu0 0.0
    %197 = vmatmul.mubr.f32.gmra.mrb[0].mxu0 %v65
    %v198 = vpop.f32.mrb[0].mxu0
    %v199 = vadd.f32 0.0, %v198
    %v200 = vpop.f32.mrb[0].mxu0
    %201 = vmatprep.mubr.f32.mxu0 0.0
    %202 = vmatmul.mubr.f32.gmra.mrb[0].mxu0 %v68
    %v203 = vpop.f32.mrb[0].mxu0
    %v204 = vadd.f32 0.0, %v203
    %v205 = vpop.f32.mrb[0].mxu0
    %206 = vmatprep.mubr.f32.mxu0 0.0
    %207 = vmatmul.mubr.f32.gmra.mrb[0].mxu0 %v71
    %v208 = vpop.f32.mrb[0].mxu0
    %v209 = vadd.f32 0.0, %v208
    %v210 = vpop.f32.mrb[0].mxu0
    %211 = vmatprep.mubr.f32.mxu0 0.0
    %212 = vmatmul.mubr.f32.gmra.mrb[0].mxu0 %v74
    %v213 = vpop.f32.mrb[0].mxu0
    %v214 = vadd.f32 0.0, %v213
    %v215 = vpop.f32.mrb[0].mxu0
    %216 = vmatprep.mubr.f32.mxu0 0.0
    %217 = vmatmul.mubr.f32.gmra.mrb[0].mxu0 %v77
    %v218 = vpop.f32.mrb[0].mxu0
    %v219 = vadd.f32 0.0, %v218
    %v220 = vpop.f32.mrb[0].mxu0
    %221 = vmatprep.mubr.f32.mxu0 0.0
    %222 = vmatmul.mubr.f32.gmra.mrb[0].mxu0 %v80
    %v223 = vpop.f32.mrb[0].mxu0
    %v224 = vadd.f32 0.0, %v223
    %v225 = vpop.f32.mrb[0].mxu0
    %226 = vmatprep.mubr.f32.mxu0 0.0
    %227 = vmatmul.mubr.f32.gmra.mrb[0].mxu0 %v83
    %v228 = vpop.f32.mrb[0].mxu0
    %v229 = vadd.f32 0.0, %v228
    %v230 = vpop.f32.mrb[0].mxu0
    %231 = vmatprep.mubr.f32.mxu0 0.0
    %232 = vmatmul.mubr.f32.gmra.mrb[0].mxu0 %v86
    %v233 = vpop.f32.mrb[0].mxu0
    %v234 = vadd.f32 0.0, %v233
    %v235 = vpop.f32.mrb[0].mxu0
    %236 = vdwg.mxu0
    %v237 = vld [vmem:[%s2] sm:$0x1]
    %v239 = vlaneseq
    %v240 = vshrl.u32 %v239, 7
    %v241 = vsub.s32 0, %v240
    %v242 = vrot.slane %v237, %v241
    %v244 = vmul.f32 %v159, %v242
    %v245 = vmul.f32 %v164, %v242
    %v246 = vmul.f32 %v169, %v242
    %v247 = vmul.f32 %v174, %v242
    %v248 = vmul.f32 %v179, %v242
    %v249 = vmul.f32 %v184, %v242
    %v250 = vmul.f32 %v189, %v242
    %v251 = vmul.f32 %v194, %v242
    %v252 = vmul.f32 %v199, %v242
    %v253 = vmul.f32 %v204, %v242
    %v254 = vmul.f32 %v209, %v242
    %v255 = vmul.f32 %v214, %v242
    %v256 = vmul.f32 %v219, %v242
    %v257 = vmul.f32 %v224, %v242
    %v258 = vmul.f32 %v229, %v242
    %v259 = vmul.f32 %v234, %v242
    %v260 = vld [vmem:[%s3] sm:$0x1]
    %v262 = vlaneseq
    %v263 = vshrl.u32 %v262, 7
    %v264 = vsub.s32 0, %v263
    %v265 = vrot.slane %v260, %v264
    %v267 = vadd.f32 %v244, %v265
    %v268 = vadd.f32 %v245, %v265
    %v269 = vadd.f32 %v246, %v265
    %v270 = vadd.f32 %v247, %v265
    %v271 = vadd.f32 %v248, %v265
    %v272 = vadd.f32 %v249, %v265
    %v273 = vadd.f32 %v250, %v265
    %v274 = vadd.f32 %v251, %v265
    %v275 = vadd.f32 %v252, %v265
    %v276 = vadd.f32 %v253, %v265
    %v277 = vadd.f32 %v254, %v265
    %v278 = vadd.f32 %v255, %v265
    %v279 = vadd.f32 %v256, %v265
    %v280 = vadd.f32 %v257, %v265
    %v281 = vadd.f32 %v258, %v265
    %v282 = vadd.f32 %v259, %v265
    %v283 = vmax.f32 %v267, 0.0
    %v284 = vmax.f32 %v268, 0.0
    %v285 = vmax.f32 %v269, 0.0
    %v286 = vmax.f32 %v270, 0.0
    %v287 = vmax.f32 %v271, 0.0
    %v288 = vmax.f32 %v272, 0.0
    %v289 = vmax.f32 %v273, 0.0
    %v290 = vmax.f32 %v274, 0.0
    %v291 = vmax.f32 %v275, 0.0
    %v292 = vmax.f32 %v276, 0.0
    %v293 = vmax.f32 %v277, 0.0
    %v294 = vmax.f32 %v278, 0.0
    %v295 = vmax.f32 %v279, 0.0
    %v296 = vmax.f32 %v280, 0.0
    %v297 = vmax.f32 %v281, 0.0
    %v298 = vmax.f32 %v282, 0.0
    %299 = vst [vmem:[#allocation2] sm:$0xff] %v283
    %300 = vst [vmem:[#allocation2 + $0x8] sm:$0xff] %v284
    %301 = vst [vmem:[#allocation2 + $0x10] sm:$0xff] %v285
    %302 = vst [vmem:[#allocation2 + $0x18] sm:$0xff] %v286
    %303 = vst [vmem:[#allocation2 + $0x20] sm:$0xff] %v287
    %304 = vst [vmem:[#allocation2 + $0x28] sm:$0xff] %v288
    %305 = vst [vmem:[#allocation2 + $0x30] sm:$0xff] %v289
    %306 = vst [vmem:[#allocation2 + $0x38] sm:$0xff] %v290
    %307 = vst [vmem:[#allocation2 + $0x40] sm:$0xff] %v291
    %308 = vst [vmem:[#allocation2 + $0x48] sm:$0xff] %v292
    %309 = vst [vmem:[#allocation2 + $0x50] sm:$0xff] %v293
    %310 = vst [vmem:[#allocation2 + $0x58] sm:$0xff] %v294
    %311 = vst [vmem:[#allocation2 + $0x60] sm:$0xff] %v295
    %312 = vst [vmem:[#allocation2 + $0x68] sm:$0xff] %v296
    %313 = vst [vmem:[#allocation2 + $0x70] sm:$0xff] %v297
    %314 = vst [vmem:[#allocation2 + $0x78] sm:$0xff] %v298
    // Predicated region
    $region18: #{tpu_custom_call.1} parent=1 // pred_check
      _
    $region19: #{tpu_custom_call.1} parent=1 // pred_check_branch
      %316 = sbr.rel (0) target = $region21
    $region20: #{tpu_custom_call.1} parent=1 // pred_region
      %s318 = ssub.s32 2048, 2048
      %319 = vsyncadd [#allocation3], %s318
      %s320 = sshll.u32 [#allocation2], 4
      %s321 = int_to_ptr.vmem [resolvable:$true] %s320
      %326 = dma.vmem_to_hbm [thread:$0]  %s321, 2048, %s4, [#allocation3], 128, 128, 8
    $region21: #{tpu_custom_call.1} parent=1 // pred_fallthru
      _
    // Predicated region
    $region22: #{tpu_custom_call.1} parent=1 // pred_check
      _
    $region23: #{tpu_custom_call.1} parent=1 // pred_check_branch
      %328 = sbr.rel (0) target = $region25
    $region24: #{tpu_custom_call.1} parent=1 // pred_region
      %329 = dma.done [#allocation3], 2048
    $region25: #{tpu_custom_call.1} parent=1 // pred_fallthru
      _
    %330 = vsyncpa [#allocation3], 1

</llo_original>
